<compile_context>
chip_gen: v7x
topology: tpu7x:2x2x1
jax: 0.10.0
libtpu: 0.0.40
codegen_flags: <defaults>
</compile_context>

<pallas_src>
import functools

import jax
import jax.numpy as jnp
from jax.experimental import pallas as pl
from jax.experimental.pallas import tpu as pltpu

EPSILON = 1e-06

LANES = 128
ACC_ROWS = 128              # fixed accumulator height (decoupled from block_rows)
DEFAULT_BLOCK_ROWS = 2048   # 1 MiB f32 per input per grid step


def _dice_kernel(pred_ref, mask_ref, out_ref, acc_i_ref, acc_s_ref, *,
                 block_rows, acc_rows, total_rows, has_edge):
    """Streaming reduction over one (block_rows, 128) tile.

    pred_ref, mask_ref   : VMEM (block_rows, 128) input tiles
    out_ref              : SMEM (1, 2) partials [intersect, sum(pred)+sum(mask)]
    acc_i_ref, acc_s_ref : VMEM (acc_rows, 128) f32 running vector sums
    """
    j = pl.program_id(0)
    n_chunks = block_rows // acc_rows

    @pl.when(j == 0)
    def _init():
        acc_i_ref[...] = jnp.zeros_like(acc_i_ref)
        acc_s_ref[...] = jnp.zeros_like(acc_s_ref)

    def accumulate(mask_rows):
        # Fold every chunk of this block in registers, then a single
        # read-modify-write of the small accumulators.
        if mask_rows:
            # Loop-invariant iota compared against a per-chunk scalar bound.
            row_iota = jax.lax.broadcasted_iota(jnp.int32, (acc_rows, LANES), 0)
            bound = total_rows - j * block_rows   # valid rows in this block
        prod = None
        ssum = None
        for c in range(n_chunks):
            pc = pred_ref[pl.ds(c * acc_rows, acc_rows), :].astype(jnp.float32)
            mc = mask_ref[pl.ds(c * acc_rows, acc_rows), :].astype(jnp.float32)
            if mask_rows:
                valid = row_iota < (bound - c * acc_rows)
                pc = jnp.where(valid, pc, 0.0)
                mc = jnp.where(valid, mc, 0.0)
            ti = pc * mc
            ts = pc + mc
            prod = ti if prod is None else prod + ti
            ssum = ts if ssum is None else ssum + ts
        acc_i_ref[...] += prod
        acc_s_ref[...] += ssum

    if has_edge:
        # Only the (single) partial last block pays the masking VALU work;
        # the edge DMA's out-of-bounds rows may hold garbage, the mask zeroes
        # their contribution.
        is_edge = j == pl.num_programs(0) - 1

        @pl.when(jnp.logical_not(is_edge))
        def _full():
            accumulate(False)

        @pl.when(is_edge)
        def _masked():
            accumulate(True)
    else:
        accumulate(False)

    @pl.when(j == pl.num_programs(0) - 1)
    def _finalize():
        out_ref[0, 0] = jnp.sum(acc_i_ref[...])
        out_ref[0, 1] = jnp.sum(acc_s_ref[...])


def dice_loss(pred, mask, *, block_rows=DEFAULT_BLOCK_ROWS):
    """Pallas implementation of DiceLoss.forward (returns a scalar f32).

    Accepts any shape/dtype; bf16 inputs are upcast to f32 inside the kernel,
    so do not pre-upcast on the caller side (it doubles HBM traffic).
    """
    p_flat = pred.reshape(-1)
    m_flat = mask.reshape(-1)
    n = p_flat.shape[0]

    tail_i = jnp.float32(0.0)
    tail_s = jnp.float32(0.0)

    if n < 8 * LANES:
        # Tiny input: pad up to a single (8,128) tile (cheap; zeros add 0).
        pad = 8 * LANES - n
        p2d = jnp.pad(p_flat, (0, pad)).reshape(8, LANES)
        m2d = jnp.pad(m_flat, (0, pad)).reshape(8, LANES)
        total_rows = 8
    else:
        # No full-array pad: the kernel streams the 128-aligned prefix; the
        # <128-element tail is reduced in plain JAX.
        total_rows = n // LANES
        aligned = total_rows * LANES
        if aligned != n:
            pt = p_flat[aligned:].astype(jnp.float32)
            mt = m_flat[aligned:].astype(jnp.float32)
            tail_i = jnp.sum(mt * pt)
            tail_s = jnp.sum(pt) + jnp.sum(mt)
            p_flat = p_flat[:aligned]
            m_flat = m_flat[:aligned]
        p2d = p_flat.reshape(total_rows, LANES)
        m2d = m_flat.reshape(total_rows, LANES)

    # Block height: large (amortises ~0.35us/step pipeline overhead), multiple
    # of 8 and of the accumulator height, never exceeding the array.  At the
    # default (2048,128) f32: 2 inputs x 2 pipeline buffers + 2 small
    # accumulators ~ 4.3 MiB VMEM -- inside every generation's scoped default.
    block_rows = min(block_rows, (total_rows // 8) * 8)
    block_rows = max(8, (block_rows // 8) * 8)
    acc_rows = min(ACC_ROWS, block_rows)
    block_rows = (block_rows // acc_rows) * acc_rows
    n_blocks = pl.cdiv(total_rows, block_rows)
    has_edge = (total_rows % block_rows) != 0

    kernel = functools.partial(
        _dice_kernel,
        block_rows=block_rows,
        acc_rows=acc_rows,
        total_rows=total_rows,
        has_edge=has_edge,
    )

    streamed = total_rows * LANES
    bytes_in = streamed * (pred.dtype.itemsize + mask.dtype.itemsize)

    partials = pl.pallas_call(
        kernel,
        out_shape=jax.ShapeDtypeStruct((1, 2), jnp.float32),
        grid_spec=pltpu.PrefetchScalarGridSpec(
            num_scalar_prefetch=0,
            grid=(n_blocks,),
            in_specs=[
                pl.BlockSpec((block_rows, LANES), lambda j: (j, 0)),
                pl.BlockSpec((block_rows, LANES), lambda j: (j, 0)),
            ],
            out_specs=pl.BlockSpec(
                (1, 2), lambda j: (0, 0),
                memory_space=pltpu.MemorySpace.SMEM,
            ),
            scratch_shapes=[
                pltpu.VMEM((acc_rows, LANES), jnp.float32),
                pltpu.VMEM((acc_rows, LANES), jnp.float32),
            ],
        ),
        compiler_params=pltpu.CompilerParams(
            dimension_semantics=("arbitrary",),
        ),
        cost_estimate=pl.CostEstimate(
            flops=5 * streamed,
            transcendentals=0,
            bytes_accessed=bytes_in + 8,
        ),
    )(p2d, m2d)

    intersect = partials[0, 0] + tail_i
    denom = partials[0, 1] + tail_s + EPSILON
    return 1.0 - 2.0 * intersect / denom


def _dice_loss_ref(pred, mask):
    p = pred.reshape(-1).astype(jnp.float32)
    m = mask.reshape(-1).astype(jnp.float32)
    intersect = jnp.sum(m * p)
    dice_score = 2.0 * intersect / (jnp.sum(p) + jnp.sum(m) + EPSILON)
    return 1.0 - dice_score


if __name__ == "__main__":
    key = jax.random.PRNGKey(0)

    # 1) Baseline NCHW-shaped inputs (lane-aligned: 2*4*16*16 = 16 * 128).
    k1, k2 = jax.random.split(key)
    pred = jax.nn.sigmoid(jax.random.normal(k1, (2, 4, 16, 16), jnp.float32))
    mask = (jax.random.uniform(k2, (2, 4, 16, 16)) > 0.5).astype(jnp.float32)
    loss = jax.block_until_ready(dice_loss(pred, mask))
    ref = _dice_loss_ref(pred, mask)
    assert jnp.allclose(loss, ref, rtol=1e-5, atol=1e-6), (loss, ref)

    # 2) Lane-misaligned shape: exercises the plain-JAX tail path plus the
    #    pl.when-gated in-kernel edge-row masking (no full-array pad/copy).
    k3, k4 = jax.random.split(k1)
    pred2 = jax.nn.sigmoid(jax.random.normal(k3, (2, 3, 17, 13), jnp.float32))
    mask2 = (jax.random.uniform(k4, (2, 3, 17, 13)) > 0.5).astype(jnp.float32)
    loss2 = jax.block_until_ready(dice_loss(pred2, mask2))
    ref2 = _dice_loss_ref(pred2, mask2)
    assert jnp.allclose(loss2, ref2, rtol=1e-5, atol=1e-6), (loss2, ref2)

    # 3) bf16 inputs with a small block override: exercises multi-block
    #    streaming, the edge mask, and the in-kernel f32 upcast.
    k5, k6 = jax.random.split(k3)
    pred3 = jax.nn.sigmoid(
        jax.random.normal(k5, (2, 4, 16, 24), jnp.float32)).astype(jnp.bfloat16)
    mask3 = (jax.random.uniform(k6, (2, 4, 16, 24)) > 0.5).astype(jnp.bfloat16)
    loss3 = jax.block_until_ready(dice_loss(pred3, mask3, block_rows=16))
    ref3 = _dice_loss_ref(pred3, mask3)
    assert jnp.allclose(loss3, ref3, rtol=1e-4, atol=1e-5), (loss3, ref3)

    print("KERNEL_OK")
</pallas_src>

<mosaic_0001>
module attributes {stable_mosaic.version = 11 : i64} {
  func.func @_dice_kernel(%arg0: i32, %arg1: memref<16x128xf32, #tpu.memory_space<vmem>>, %arg2: memref<16x128xf32, #tpu.memory_space<vmem>>, %arg3: memref<1x2xf32, #tpu.memory_space<smem>>, %arg4: memref<16x128xf32, #tpu.memory_space<vmem>>, %arg5: memref<16x128xf32, #tpu.memory_space<vmem>>) attributes {dimension_semantics = [#tpu.dimension_semantics<arbitrary>], iteration_bounds = array<i64: 1>, scalar_prefetch = 0 : i64, scratch_operands = 2 : i64, tpu.core_type = #tpu.core_type<tc>, window_params = [{transform_indices = @transform_0, window_bounds = array<i64: 16, 128>}, {transform_indices = @transform_1, window_bounds = array<i64: 16, 128>}, {transform_indices = @transform_2, window_bounds = array<i64: 1, 2>}]} {
    %c0_i32 = arith.constant 0 : i32
    %0 = arith.cmpi eq, %arg0, %c0_i32 : i32
    %1 = arith.extui %0 : i1 to i32
    %c0_i32_0 = arith.constant 0 : i32
    %2 = arith.cmpi ne, %1, %c0_i32_0 : i32
    scf.if %2 {
      %cst = arith.constant 0.000000e+00 : f32
      %16 = vector.broadcast %cst : f32 to vector<16x128xf32>
      %c0_14 = arith.constant 0 : index
      %c0_15 = arith.constant 0 : index
      %17 = vector.load %arg4[%c0_14, %c0_15] : memref<16x128xf32, #tpu.memory_space<vmem>>, vector<16x128xf32>
      tpu.vector_store %arg4[%c0_14, %c0_15], %16 {strides = array<i32>} : memref<16x128xf32, #tpu.memory_space<vmem>>, vector<16x128xf32>,
      %cst_16 = arith.constant 0.000000e+00 : f32
      %18 = vector.broadcast %cst_16 : f32 to vector<16x128xf32>
      %c0_17 = arith.constant 0 : index
      %c0_18 = arith.constant 0 : index
      %19 = vector.load %arg5[%c0_17, %c0_18] : memref<16x128xf32, #tpu.memory_space<vmem>>, vector<16x128xf32>
      tpu.vector_store %arg5[%c0_17, %c0_18], %18 {strides = array<i32>} : memref<16x128xf32, #tpu.memory_space<vmem>>, vector<16x128xf32>,
    } else {
    }
    %c0 = arith.constant 0 : index
    %c0_1 = arith.constant 0 : index
    %3 = vector.load %arg1[%c0, %c0_1] : memref<16x128xf32, #tpu.memory_space<vmem>>, vector<16x128xf32>
    %c0_2 = arith.constant 0 : index
    %c0_3 = arith.constant 0 : index
    %4 = vector.load %arg2[%c0_2, %c0_3] : memref<16x128xf32, #tpu.memory_space<vmem>>, vector<16x128xf32>
    %5 = arith.mulf %3, %4 : vector<16x128xf32>
    %6 = arith.addf %3, %4 : vector<16x128xf32>
    %c0_4 = arith.constant 0 : index
    %c0_5 = arith.constant 0 : index
    %7 = vector.load %arg4[%c0_4, %c0_5] : memref<16x128xf32, #tpu.memory_space<vmem>>, vector<16x128xf32>
    %8 = arith.addf %7, %5 : vector<16x128xf32>
    %c0_6 = arith.constant 0 : index
    %c0_7 = arith.constant 0 : index
    %9 = vector.load %arg4[%c0_6, %c0_7] : memref<16x128xf32, #tpu.memory_space<vmem>>, vector<16x128xf32>
    tpu.vector_store %arg4[%c0_6, %c0_7], %8 {strides = array<i32>} : memref<16x128xf32, #tpu.memory_space<vmem>>, vector<16x128xf32>,
    %c0_8 = arith.constant 0 : index
    %c0_9 = arith.constant 0 : index
    %10 = vector.load %arg5[%c0_8, %c0_9] : memref<16x128xf32, #tpu.memory_space<vmem>>, vector<16x128xf32>
    %11 = arith.addf %10, %6 : vector<16x128xf32>
    %c0_10 = arith.constant 0 : index
    %c0_11 = arith.constant 0 : index
    %12 = vector.load %arg5[%c0_10, %c0_11] : memref<16x128xf32, #tpu.memory_space<vmem>>, vector<16x128xf32>
    tpu.vector_store %arg5[%c0_10, %c0_11], %11 {strides = array<i32>} : memref<16x128xf32, #tpu.memory_space<vmem>>, vector<16x128xf32>,
    %c0_i32_12 = arith.constant 0 : i32
    %13 = arith.cmpi eq, %arg0, %c0_i32_12 : i32
    %14 = arith.extui %13 : i1 to i32
    %c0_i32_13 = arith.constant 0 : i32
    %15 = arith.cmpi ne, %14, %c0_i32_13 : i32
    scf.if %15 {
      %c0_14 = arith.constant 0 : index
      %c0_15 = arith.constant 0 : index
      %16 = vector.load %arg4[%c0_14, %c0_15] : memref<16x128xf32, #tpu.memory_space<vmem>>, vector<16x128xf32>
      %17 = vector.shape_cast %16 : vector<16x128xf32> to vector<1x16x128xf32>
      %cst = arith.constant dense<0.000000e+00> : vector<1xf32>
      %18 = vector.multi_reduction <add>, %17, %cst [1, 2] : vector<1x16x128xf32> to vector<1xf32>
      %19 = vector.shape_cast %18 : vector<1xf32> to vector<1x1x1xf32>
      %20 = vector.extract %19[0, 0, 0] : f32 from vector<1x1x1xf32>
      %c0_16 = arith.constant 0 : index
      %c0_17 = arith.constant 0 : index
      %21 = memref.load %arg3[%c0_16, %c0_17] : memref<1x2xf32, #tpu.memory_space<smem>>
      memref.store %20, %arg3[%c0_16, %c0_17] : memref<1x2xf32, #tpu.memory_space<smem>>
      %c0_18 = arith.constant 0 : index
      %c0_19 = arith.constant 0 : index
      %22 = vector.load %arg5[%c0_18, %c0_19] : memref<16x128xf32, #tpu.memory_space<vmem>>, vector<16x128xf32>
      %23 = vector.shape_cast %22 : vector<16x128xf32> to vector<1x16x128xf32>
      %cst_20 = arith.constant dense<0.000000e+00> : vector<1xf32>
      %24 = vector.multi_reduction <add>, %23, %cst_20 [1, 2] : vector<1x16x128xf32> to vector<1xf32>
      %25 = vector.shape_cast %24 : vector<1xf32> to vector<1x1x1xf32>
      %26 = vector.extract %25[0, 0, 0] : f32 from vector<1x1x1xf32>
      %c0_21 = arith.constant 0 : index
      %c1 = arith.constant 1 : index
      %27 = memref.load %arg3[%c0_21, %c1] : memref<1x2xf32, #tpu.memory_space<smem>>
      memref.store %26, %arg3[%c0_21, %c1] : memref<1x2xf32, #tpu.memory_space<smem>>
    } else {
    }
    return
  }
  func.func @transform_0(%arg0: i32) -> (i32, i32) {
    %c0_i32 = arith.constant 0 : i32
    %c0_i32_0 = arith.constant 0 : i32
    return %arg0, %c0_i32 : i32, i32
  }
  func.func @transform_1(%arg0: i32) -> (i32, i32) {
    %c0_i32 = arith.constant 0 : i32
    %c0_i32_0 = arith.constant 0 : i32
    return %arg0, %c0_i32 : i32, i32
  }
  func.func @transform_2(%arg0: i32) -> (i32, i32) {
    %c0_i32 = arith.constant 0 : i32
    %c0_i32_0 = arith.constant 0 : i32
    %c0_i32_1 = arith.constant 0 : i32
    return %c0_i32, %c0_i32_0 : i32, i32
  }
}

</mosaic_0001>

<llo_original>
// kernel: tpu_custom_call.1
$region0: #{tpu_custom_call.1}
  #allocation0 [shape = 'u32[]', space=smem, size = 0x4, offset = 0x4, fixed_abs, tag = 'smem constant byte address 0x4 - core index']
  #allocation1 [shape = 'u32[144,128]{1,0:T(1,128)}', space=vmem, size = 0x12000, scoped, tag = 'internal scratch']
  #allocation2 [shape = 'f32[16,128]{1,0:T(8,128)}', space=vmem, size = 0x2000, scoped, tag = 'scratch operand']
  #allocation3 [shape = 'f32[16,128]{1,0:T(8,128)}', space=vmem, size = 0x2000, scoped, tag = 'scratch operand']
  %s0 = inlined_call_operand.hbm [shape: f32[16,128], index: 0, kind: input, shape index: {}]
  %s1 = inlined_call_operand.hbm [shape: f32[16,128], index: 1, kind: input, shape index: {}]
  %s2 = inlined_call_operand.hbm [shape: f32[1,2], index: 2, kind: output, shape index: {}]
  %s3 = sld [smem:[#allocation0]]
  $region34: #{tpu_custom_call.1} parent=0
    _
  %s5 = ssub.s32 1, %s3
  %s6 = scalar_select 0, %s5, %s3
  $region1: #{tpu_custom_call.1} parent=0
    #allocation4 [shape = 'u8[8192]{0}', space=vmem, size = 0x2000, scoped, tag = 'input window, operand 0, single buffered']
    #allocation5 [shape = 's32[1]{0}', space=sflag, size = 0x4, scoped, tag = 'scoped memory for tpu_custom_call.1']
    #allocation6 [shape = 's32[1]{0}', space=sflag, size = 0x4, scoped, tag = 'scoped memory for tpu_custom_call.1']
    #allocation7 [shape = 'u8[8192]{0}', space=vmem, size = 0x2000, scoped, tag = 'input window, operand 1, single buffered']
    #allocation8 [shape = 's32[1]{0}', space=sflag, size = 0x4, scoped, tag = 'scoped memory for tpu_custom_call.1']
    #allocation9 [shape = 'u8[512]{0}', space=smem, size = 0x200, scoped, tag = 'output window, operand 0, single buffered']
    %7 = vsyncpa [#allocation5], 0
    %8 = vsyncpa [#allocation8], 0
    %9 = vsyncpa [#allocation6], 0
    // Predicated region
    $region2: #{tpu_custom_call.1} parent=1 // pred_check
      _
    $region3: #{tpu_custom_call.1} parent=1 // pred_check_branch
      %11 = sbr.rel (0) target = $region5
    $region4: #{tpu_custom_call.1} parent=1 // pred_region
      %s13 = ssub.s32 256, 256
      %14 = vsyncadd [#allocation5], %s13
      %s15 = sshll.u32 [#allocation4], 4
      %s16 = int_to_ptr.vmem [resolvable:$true] %s15
      %21 = dma.hbm_to_vmem [thread:$0]  %s0, 256, %s16, [#allocation5], 128, 128, 8
    $region5: #{tpu_custom_call.1} parent=1 // pred_fallthru
      _
    // Predicated region
    $region6: #{tpu_custom_call.1} parent=1 // pred_check
      _
    $region7: #{tpu_custom_call.1} parent=1 // pred_check_branch
      %23 = sbr.rel (0) target = $region9
    $region8: #{tpu_custom_call.1} parent=1 // pred_region
      %s25 = ssub.s32 256, 256
      %26 = vsyncadd [#allocation8], %s25
      %s27 = sshll.u32 [#allocation7], 4
      %s28 = int_to_ptr.vmem [resolvable:$true] %s27
      %33 = dma.hbm_to_vmem [thread:$0]  %s1, 256, %s28, [#allocation8], 128, 128, 8
    $region9: #{tpu_custom_call.1} parent=1 // pred_fallthru
      _
    // Predicated region
    $region10: #{tpu_custom_call.1} parent=1 // pred_check
      _
    $region11: #{tpu_custom_call.1} parent=1 // pred_check_branch
      %35 = sbr.rel (0) target = $region13
    $region12: #{tpu_custom_call.1} parent=1 // pred_region
      %36 = dma.done [#allocation5], 256
    $region13: #{tpu_custom_call.1} parent=1 // pred_fallthru
      _
    // Predicated region
    $region14: #{tpu_custom_call.1} parent=1 // pred_check
      _
    $region15: #{tpu_custom_call.1} parent=1 // pred_check_branch
      %38 = sbr.rel (0) target = $region17
    $region16: #{tpu_custom_call.1} parent=1 // pred_region
      %39 = dma.done [#allocation8], 256
    $region17: #{tpu_custom_call.1} parent=1 // pred_fallthru
      _
    %p40 = scmp.eq.s32.totalorder 0, 0
    // Predicated region
    $region18: #{tpu_custom_call.1} parent=1 // pred_check
      %p41 = pneg %p40
    $region19: #{tpu_custom_call.1} parent=1 // pred_check_branch
      %43 = sbr.rel (%p41) target = $region21
    $region20: #{tpu_custom_call.1} parent=1 // pred_region
      %44 = vst [vmem:[#allocation2] sm:$0xff] 0.0
      %45 = vst [vmem:[#allocation2 + $0x8] sm:$0xff] 0.0
      %46 = vst [vmem:[#allocation3] sm:$0xff] 0.0
      %47 = vst [vmem:[#allocation3 + $0x8] sm:$0xff] 0.0
    $region21: #{tpu_custom_call.1} parent=1 // pred_fallthru
      _
    %v48 = vld [vmem:[#allocation4] sm:$0xff]
    %v49 = vld [vmem:[#allocation4 + $0x8] sm:$0xff]
    %v50 = vld [vmem:[#allocation7] sm:$0xff]
    %v51 = vld [vmem:[#allocation7 + $0x8] sm:$0xff]
    %v52 = vmul.f32 %v48, %v50
    %v53 = vmul.f32 %v49, %v51
    %v54 = vadd.f32 %v48, %v50
    %v55 = vadd.f32 %v49, %v51
    %v56 = vld [vmem:[#allocation2] sm:$0xff]
    %v57 = vld [vmem:[#allocation2 + $0x8] sm:$0xff]
    %v58 = vadd.f32 %v56, %v52
    %v59 = vadd.f32 %v57, %v53
    %60 = vst [vmem:[#allocation2] sm:$0xff] %v58
    %61 = vst [vmem:[#allocation2 + $0x8] sm:$0xff] %v59
    %v62 = vld [vmem:[#allocation3] sm:$0xff]
    %v63 = vld [vmem:[#allocation3 + $0x8] sm:$0xff]
    %v64 = vadd.f32 %v62, %v54
    %v65 = vadd.f32 %v63, %v55
    %66 = vst [vmem:[#allocation3] sm:$0xff] %v64
    %67 = vst [vmem:[#allocation3 + $0x8] sm:$0xff] %v65
    // Predicated region
    $region22: #{tpu_custom_call.1} parent=1 // pred_check
      %p68 = pneg %p40
    $region23: #{tpu_custom_call.1} parent=1 // pred_check_branch
      %70 = sbr.rel (%p68) target = $region25
    $region24: #{tpu_custom_call.1} parent=1 // pred_region
      %v71 = vld [vmem:[#allocation2] sm:$0xff]
      %v72 = vld [vmem:[#allocation2 + $0x8] sm:$0xff]
      %v73 = vadd.f32 %v71, %v72
      %74 = vadd.xlane.f32.xlu0 %v73
      %v75 = vpop.xlane.xlu0 %74
      %v76 = vrot.slane %v75, 4
      %v77 = vadd.f32 %v75, %v76
      %v78 = vrot.slane %v77, 2
      %v79 = vadd.f32 %v77, %v78
      %v80 = vrot.slane %v79, 1
      %v81 = vadd.f32 %v79, %v80
      %s82 = vtos %v81
      %s83 = scalar_lea.smem [#allocation9], 0
      %84 = sst [smem:[%s83]] %s82
      %v85 = vld [vmem:[#allocation3] sm:$0xff]
      %v86 = vld [vmem:[#allocation3 + $0x8] sm:$0xff]
      %v87 = vadd.f32 %v85, %v86
      %88 = vadd.xlane.f32.xlu0 %v87
      %v89 = vpop.xlane.xlu0 %88
      %v90 = vrot.slane %v89, 4
      %v91 = vadd.f32 %v89, %v90
      %v92 = vrot.slane %v91, 2
      %v93 = vadd.f32 %v91, %v92
      %v94 = vrot.slane %v93, 1
      %v95 = vadd.f32 %v93, %v94
      %s96 = vtos %v95
      %s97 = scalar_lea.smem [#allocation9], 1
      %98 = sst [smem:[%s97]] %s96
    $region25: #{tpu_custom_call.1} parent=1 // pred_fallthru
      _
    // Predicated region
    $region26: #{tpu_custom_call.1} parent=1 // pred_check
      _
    $region27: #{tpu_custom_call.1} parent=1 // pred_check_branch
      %100 = sbr.rel (0) target = $region29
    $region28: #{tpu_custom_call.1} parent=1 // pred_region
      %s102 = ssub.s32 16, 16
      %103 = vsyncadd [#allocation6], %s102
      %106 = dma.smem_to_hbm [#allocation9], 16, %s2, [#allocation6]
    $region29: #{tpu_custom_call.1} parent=1 // pred_fallthru
      _
    // Predicated region
    $region30: #{tpu_custom_call.1} parent=1 // pred_check
      _
    $region31: #{tpu_custom_call.1} parent=1 // pred_check_branch
      %108 = sbr.rel (0) target = $region33
    $region32: #{tpu_custom_call.1} parent=1 // pred_region
      %109 = dma.done [#allocation6], 16
    $region33: #{tpu_custom_call.1} parent=1 // pred_fallthru
      _
    %110 = sfence
    %111 = vsyncpa [#allocation5], 1
    %112 = vsyncpa [#allocation8], 1
    %113 = vsyncpa [#allocation6], 1

</llo_original>
